<compile_context>
chip_gen: v7x
topology: tpu7x:2x2x1
jax: 0.10.0
libtpu: 0.0.40
codegen_flags: <defaults>
</compile_context>

<pallas_src>
import jax
import jax.numpy as jnp
from jax.experimental import pallas as pl
from jax.experimental.pallas import tpu as pltpu

NUM_LAYERS = 3
HIDDEN_DIM = 32
PACK = 128          # lane-dense output width (multiple of 128)


def _risk_kernel(x_ref, wh_ref, bh_ref, wl_ref, bl_ref, wu_ref, out_ref):
    """One batch tile of the AccountRiskAssessment forward pass.

    x_ref:  (TB, H)          input features
    wh_ref: (L-1, H, H)      hidden BNN layer weights (effective = mu + sigma*eps)
    bh_ref: (L-1, 1, H)      hidden BNN layer biases
    wl_ref: (H, PACK)        last BNN layer weight, zero-padded to 128 lanes
    bl_ref: (1, PACK)        last BNN layer bias; lane H = 1.0 (bias lane), rest 0
    wu_ref: (1, PACK)        uncertainty head weight row; lane H = b_unc, rest 0
    out_ref:(TB, PACK)       packed output: lanes [0,H) = risk, lane H = uncertainty
    """
    h = x_ref[...]
    # Hidden layers (static unroll over a small fixed count).
    for layer in range(NUM_LAYERS - 1):
        h = jnp.dot(h, wh_ref[layer], preferred_element_type=jnp.float32)
        h = jnp.maximum(h + bh_ref[layer], 0.0)

    # Last layer computed directly into the lane-dense (TB, PACK) slab:
    # lanes [0, H) = risk score, lane H = ReLU(0 + 1.0) = 1.0 (bias lane),
    # lanes (H, PACK) = ReLU(0 + 0) = 0.
    hp = jnp.dot(h, wl_ref[...], preferred_element_type=jnp.float32)
    hp = jnp.maximum(hp + bl_ref[...], 0.0)

    # Uncertainty head: VPU multiply + cross-lane reduce.  The bias lane
    # (hp lane H == 1.0) times wu lane H (== b_unc) folds the head bias in.
    z = jnp.sum(hp * wu_ref[...], axis=-1, keepdims=True)
    # Numerically stable softplus: max(z, 0) + log1p(exp(-|z|)).
    unc = jnp.maximum(z, 0.0) + jnp.log1p(jnp.exp(-jnp.abs(z)))

    # Deposit the uncertainty scalar in lane H; single dense 128-lane store.
    lane = jax.lax.broadcasted_iota(jnp.int32, hp.shape, dimension=1)
    out_ref[...] = jnp.where(lane == HIDDEN_DIM, unc, hp)


def account_risk_assessment(x, w_stack, b_stack, w_unc, b_unc, *, tile_b=None):
    """Returns (risk_score (B, H), uncertainty (B, 1))."""
    B, H = x.shape
    L = w_stack.shape[0]
    assert L == NUM_LAYERS and H == HIDDEN_DIM
    if tile_b is None:
        tile_b = min(B, 512)
    assert B % tile_b == 0 and tile_b % 8 == 0, (B, tile_b)

    # Wrapper-side layout plumbing (outside the kernel).
    w_hidden = w_stack[:-1]                                               # (L-1, H, H)
    b_hidden = b_stack[:-1].reshape(L - 1, 1, H)                          # (L-1, 1, H)
    w_last = jnp.pad(w_stack[-1], ((0, 0), (0, PACK - H)))                # (H, PACK)
    b_last_row = jnp.concatenate([
        b_stack[-1].astype(jnp.float32),
        jnp.ones((1,), jnp.float32),                                       # bias lane
        jnp.zeros((PACK - H - 1,), jnp.float32),
    ]).reshape(1, PACK)                                                    # (1, PACK)
    w_unc_row = jnp.concatenate([
        w_unc.reshape(H).astype(jnp.float32),
        jnp.asarray(b_unc, jnp.float32).reshape(1),                        # head bias
        jnp.zeros((PACK - H - 1,), jnp.float32),
    ]).reshape(1, PACK)                                                    # (1, PACK)

    grid = (B // tile_b,)
    packed = pl.pallas_call(
        _risk_kernel,
        out_shape=jax.ShapeDtypeStruct((B, PACK), jnp.float32),
        grid_spec=pltpu.PrefetchScalarGridSpec(
            num_scalar_prefetch=0,
            grid=grid,
            in_specs=[
                pl.BlockSpec((tile_b, H), lambda i: (i, 0)),              # batch tile
                pl.BlockSpec((L - 1, H, H), lambda i: (0, 0, 0)),         # pinned weights
                pl.BlockSpec((L - 1, 1, H), lambda i: (0, 0, 0)),
                pl.BlockSpec((H, PACK), lambda i: (0, 0)),
                pl.BlockSpec((1, PACK), lambda i: (0, 0)),
                pl.BlockSpec((1, PACK), lambda i: (0, 0)),
            ],
            out_specs=pl.BlockSpec((tile_b, PACK), lambda i: (i, 0)),
        ),
        compiler_params=pltpu.CompilerParams(
            dimension_semantics=("parallel",)),   # megacore sharding on v7x
    )(x, w_hidden, b_hidden, w_last, b_last_row, w_unc_row)

    risk = packed[:, :H]               # (B, H)
    uncertainty = packed[:, H:H + 1]   # (B, 1)
    return risk, uncertainty


def _init_params(key):
    """Deterministic 'Bayesian' weights: w = mu + sigma * eps, sampled once."""
    keys = jax.random.split(key, 2 * NUM_LAYERS + 2)
    scale = 1.0 / jnp.sqrt(jnp.float32(HIDDEN_DIM))
    sigma = 0.01
    ws, bs = [], []
    for layer in range(NUM_LAYERS):
        mu = jax.random.normal(keys[2 * layer], (HIDDEN_DIM, HIDDEN_DIM), jnp.float32) * scale
        eps = jax.random.normal(keys[2 * layer + 1], (HIDDEN_DIM, HIDDEN_DIM), jnp.float32)
        ws.append(mu + sigma * eps)
        bs.append(jnp.full((HIDDEN_DIM,), 0.01 * (layer + 1), jnp.float32))
    w_stack = jnp.stack(ws, axis=0)                                        # (L, H, H)
    b_stack = jnp.stack(bs, axis=0)                                        # (L, H)
    w_unc = jax.random.normal(keys[-2], (HIDDEN_DIM, 1), jnp.float32) * scale  # (H, 1)
    b_unc = jnp.float32(0.1)
    return w_stack, b_stack, w_unc, b_unc


def _reference(x, w_stack, b_stack, w_unc, b_unc):
    h = x
    for layer in range(NUM_LAYERS):
        h = jnp.maximum(h @ w_stack[layer] + b_stack[layer][None, :], 0.0)
    risk = h
    z = h @ w_unc + b_unc
    unc = jnp.maximum(z, 0.0) + jnp.log1p(jnp.exp(-jnp.abs(z)))
    return risk, unc


if __name__ == "__main__":
    BATCH = 64
    key = jax.random.PRNGKey(0)
    k_x, k_p = jax.random.split(key)
    x = jax.random.normal(k_x, (BATCH, HIDDEN_DIM), jnp.float32)
    w_stack, b_stack, w_unc, b_unc = _init_params(k_p)

    # tile_b=8 -> grid=(8,): exercises the batch-tiled pipeline at small shapes.
    risk, unc = account_risk_assessment(x, w_stack, b_stack, w_unc, b_unc, tile_b=8)
    jax.block_until_ready((risk, unc))

    r_ref, u_ref = _reference(x, w_stack, b_stack, w_unc, b_unc)
    assert risk.shape == (BATCH, HIDDEN_DIM)
    assert unc.shape == (BATCH, 1)
    assert jnp.allclose(risk, r_ref, atol=1e-5, rtol=1e-5), float(jnp.max(jnp.abs(risk - r_ref)))
    assert jnp.allclose(unc, u_ref, atol=1e-5, rtol=1e-5), float(jnp.max(jnp.abs(unc - u_ref)))

    print("KERNEL_OK")
</pallas_src>

<mosaic_0001>
module attributes {stable_mosaic.version = 11 : i64} {
  func.func @_risk_kernel(%arg0: i32, %arg1: memref<8x32xf32, #tpu.memory_space<vmem>>, %arg2: memref<2x32x32xf32, #tpu.memory_space<vmem>>, %arg3: memref<2x1x32xf32, #tpu.memory_space<vmem>>, %arg4: memref<32x128xf32, #tpu.memory_space<vmem>>, %arg5: memref<1x128xf32, #tpu.memory_space<vmem>>, %arg6: memref<1x128xf32, #tpu.memory_space<vmem>>, %arg7: memref<8x128xf32, #tpu.memory_space<vmem>>) attributes {dimension_semantics = [#tpu.dimension_semantics<parallel>], iteration_bounds = array<i64: 8>, scalar_prefetch = 0 : i64, scratch_operands = 0 : i64, tpu.core_type = #tpu.core_type<tc>, window_params = [{transform_indices = @transform_0, window_bounds = array<i64: 8, 32>}, {pipeline_mode = #tpu.pipeline_mode<synchronous>, transform_indices = @transform_1, window_bounds = array<i64: 2, 32, 32>}, {pipeline_mode = #tpu.pipeline_mode<synchronous>, transform_indices = @transform_2, window_bounds = array<i64: 2, 1, 32>}, {pipeline_mode = #tpu.pipeline_mode<synchronous>, transform_indices = @transform_3, window_bounds = array<i64: 32, 128>}, {pipeline_mode = #tpu.pipeline_mode<synchronous>, transform_indices = @transform_4, window_bounds = array<i64: 1, 128>}, {pipeline_mode = #tpu.pipeline_mode<synchronous>, transform_indices = @transform_5, window_bounds = array<i64: 1, 128>}, {transform_indices = @transform_6, window_bounds = array<i64: 8, 128>}]} {
    %c0 = arith.constant 0 : index
    %c0_0 = arith.constant 0 : index
    %0 = vector.load %arg1[%c0, %c0_0] : memref<8x32xf32, #tpu.memory_space<vmem>>, vector<8x32xf32>
    %c0_1 = arith.constant 0 : index
    %c0_2 = arith.constant 0 : index
    %c0_3 = arith.constant 0 : index
    %1 = vector.load %arg2[%c0_1, %c0_2, %c0_3] : memref<2x32x32xf32, #tpu.memory_space<vmem>>, vector<1x32x32xf32>
    %2 = vector.shape_cast %1 : vector<1x32x32xf32> to vector<32x32xf32>
    %cst = arith.constant dense<0.000000e+00> : vector<8x32xf32>
    %3 = tpu.matmul %0, %2, %cst {dimension_numbers = #tpu.dot_dimension_numbers<[1], [0], [0], [1], [0, 0, 1, 1], [], []>} : vector<8x32xf32>, vector<32x32xf32>, vector<8x32xf32> -> vector<8x32xf32>
    %c0_4 = arith.constant 0 : index
    %c0_5 = arith.constant 0 : index
    %c0_6 = arith.constant 0 : index
    %4 = vector.load %arg3[%c0_4, %c0_5, %c0_6] : memref<2x1x32xf32, #tpu.memory_space<vmem>>, vector<1x1x32xf32>
    %5 = vector.shape_cast %4 : vector<1x1x32xf32> to vector<1x32xf32>
    %6 = vector.broadcast %5 : vector<1x32xf32> to vector<8x32xf32>
    %7 = arith.addf %3, %6 : vector<8x32xf32>
    %cst_7 = arith.constant 0.000000e+00 : f32
    %8 = vector.broadcast %cst_7 : f32 to vector<8x32xf32>
    %9 = arith.maximumf %7, %8 : vector<8x32xf32>
    %c1 = arith.constant 1 : index
    %c0_8 = arith.constant 0 : index
    %c0_9 = arith.constant 0 : index
    %10 = vector.load %arg2[%c1, %c0_8, %c0_9] : memref<2x32x32xf32, #tpu.memory_space<vmem>>, vector<1x32x32xf32>
    %11 = vector.shape_cast %10 : vector<1x32x32xf32> to vector<32x32xf32>
    %cst_10 = arith.constant dense<0.000000e+00> : vector<8x32xf32>
    %12 = tpu.matmul %9, %11, %cst_10 {dimension_numbers = #tpu.dot_dimension_numbers<[1], [0], [0], [1], [0, 0, 1, 1], [], []>} : vector<8x32xf32>, vector<32x32xf32>, vector<8x32xf32> -> vector<8x32xf32>
    %c1_11 = arith.constant 1 : index
    %c0_12 = arith.constant 0 : index
    %c0_13 = arith.constant 0 : index
    %13 = vector.load %arg3[%c1_11, %c0_12, %c0_13] : memref<2x1x32xf32, #tpu.memory_space<vmem>>, vector<1x1x32xf32>
    %14 = vector.shape_cast %13 : vector<1x1x32xf32> to vector<1x32xf32>
    %15 = vector.broadcast %14 : vector<1x32xf32> to vector<8x32xf32>
    %16 = arith.addf %12, %15 : vector<8x32xf32>
    %cst_14 = arith.constant 0.000000e+00 : f32
    %17 = vector.broadcast %cst_14 : f32 to vector<8x32xf32>
    %18 = arith.maximumf %16, %17 : vector<8x32xf32>
    %c0_15 = arith.constant 0 : index
    %c0_16 = arith.constant 0 : index
    %19 = vector.load %arg4[%c0_15, %c0_16] : memref<32x128xf32, #tpu.memory_space<vmem>>, vector<32x128xf32>
    %cst_17 = arith.constant dense<0.000000e+00> : vector<8x128xf32>
    %20 = tpu.matmul %18, %19, %cst_17 {dimension_numbers = #tpu.dot_dimension_numbers<[1], [0], [0], [1], [0, 0, 1, 1], [], []>} : vector<8x32xf32>, vector<32x128xf32>, vector<8x128xf32> -> vector<8x128xf32>
    %c0_18 = arith.constant 0 : index
    %c0_19 = arith.constant 0 : index
    %21 = vector.load %arg5[%c0_18, %c0_19] : memref<1x128xf32, #tpu.memory_space<vmem>>, vector<1x128xf32>
    %22 = vector.broadcast %21 : vector<1x128xf32> to vector<8x128xf32>
    %23 = arith.addf %20, %22 : vector<8x128xf32>
    %cst_20 = arith.constant 0.000000e+00 : f32
    %24 = vector.broadcast %cst_20 : f32 to vector<8x128xf32>
    %25 = arith.maximumf %23, %24 : vector<8x128xf32>
    %c0_21 = arith.constant 0 : index
    %c0_22 = arith.constant 0 : index
    %26 = vector.load %arg6[%c0_21, %c0_22] : memref<1x128xf32, #tpu.memory_space<vmem>>, vector<1x128xf32>
    %27 = vector.broadcast %26 : vector<1x128xf32> to vector<8x128xf32>
    %28 = arith.mulf %25, %27 : vector<8x128xf32>
    %cst_23 = arith.constant dense<0.000000e+00> : vector<8xf32>
    %29 = vector.multi_reduction <add>, %28, %cst_23 [1] : vector<8x128xf32> to vector<8xf32>
    %30 = vector.shape_cast %29 : vector<8xf32> to vector<8x1xf32>
    %cst_24 = arith.constant 0.000000e+00 : f32
    %31 = vector.broadcast %cst_24 : f32 to vector<8x1xf32>
    %32 = arith.maximumf %30, %31 : vector<8x1xf32>
    %33 = math.absf %30 : vector<8x1xf32>
    %cst_25 = arith.constant 0.000000e+00 : f32
    %34 = vector.broadcast %cst_25 : f32 to vector<8x1xf32>
    %35 = arith.subf %34, %33 : vector<8x1xf32>
    %36 = math.exp %35 : vector<8x1xf32>
    %37 = math.log1p %36 : vector<8x1xf32>
    %38 = arith.addf %32, %37 : vector<8x1xf32>
    %39 = tpu.iota {dimensions = array<i32: 1>} : vector<8x128xi32>
    %c32_i32 = arith.constant 32 : i32
    %40 = vector.broadcast %c32_i32 : i32 to vector<8x128xi32>
    %41 = arith.cmpi eq, %39, %40 : vector<8x128xi32>
    %42 = vector.shape_cast %38 : vector<8x1xf32> to vector<8x1xf32>
    %43 = vector.broadcast %42 : vector<8x1xf32> to vector<8x128xf32>
    %44 = arith.select %41, %43, %25 : vector<8x128xi1>, vector<8x128xf32>
    %c0_26 = arith.constant 0 : index
    %c0_27 = arith.constant 0 : index
    %45 = vector.load %arg7[%c0_26, %c0_27] : memref<8x128xf32, #tpu.memory_space<vmem>>, vector<8x128xf32>
    tpu.vector_store %arg7[%c0_26, %c0_27], %44 {strides = array<i32>} : memref<8x128xf32, #tpu.memory_space<vmem>>, vector<8x128xf32>,
    return
  }
  func.func @transform_0(%arg0: i32) -> (i32, i32) {
    %c0_i32 = arith.constant 0 : i32
    %c0_i32_0 = arith.constant 0 : i32
    return %arg0, %c0_i32 : i32, i32
  }
  func.func @transform_1(%arg0: i32) -> (i32, i32, i32) {
    %c0_i32 = arith.constant 0 : i32
    %c0_i32_0 = arith.constant 0 : i32
    %c0_i32_1 = arith.constant 0 : i32
    %c0_i32_2 = arith.constant 0 : i32
    return %c0_i32, %c0_i32_0, %c0_i32_1 : i32, i32, i32
  }
  func.func @transform_2(%arg0: i32) -> (i32, i32, i32) {
    %c0_i32 = arith.constant 0 : i32
    %c0_i32_0 = arith.constant 0 : i32
    %c0_i32_1 = arith.constant 0 : i32
    %c0_i32_2 = arith.constant 0 : i32
    return %c0_i32, %c0_i32_0, %c0_i32_1 : i32, i32, i32
  }
  func.func @transform_3(%arg0: i32) -> (i32, i32) {
    %c0_i32 = arith.constant 0 : i32
    %c0_i32_0 = arith.constant 0 : i32
    %c0_i32_1 = arith.constant 0 : i32
    return %c0_i32, %c0_i32_0 : i32, i32
  }
  func.func @transform_4(%arg0: i32) -> (i32, i32) {
    %c0_i32 = arith.constant 0 : i32
    %c0_i32_0 = arith.constant 0 : i32
    %c0_i32_1 = arith.constant 0 : i32
    return %c0_i32, %c0_i32_0 : i32, i32
  }
  func.func @transform_5(%arg0: i32) -> (i32, i32) {
    %c0_i32 = arith.constant 0 : i32
    %c0_i32_0 = arith.constant 0 : i32
    %c0_i32_1 = arith.constant 0 : i32
    return %c0_i32, %c0_i32_0 : i32, i32
  }
  func.func @transform_6(%arg0: i32) -> (i32, i32) {
    %c0_i32 = arith.constant 0 : i32
    %c0_i32_0 = arith.constant 0 : i32
    return %arg0, %c0_i32 : i32, i32
  }
}

</mosaic_0001>

<llo_original>
// kernel: tpu_custom_call.1
$region0: #{tpu_custom_call.1}
  #allocation0 [shape = 'u32[]', space=smem, size = 0x4, offset = 0x4, fixed_abs, tag = 'smem constant byte address 0x4 - core index']
  #allocation1 [shape = 'u32[144,128]{1,0:T(1,128)}', space=vmem, size = 0x12000, scoped, tag = 'internal scratch']
  %s0 = inlined_call_operand.vmem [shape: f32[64,32], index: 0, kind: input, shape index: {}]
  %s1 = inlined_call_operand.vmem [shape: f32[2,32,32], index: 1, kind: input, shape index: {}]
  %s2 = inlined_call_operand.vmem [shape: f32[2,1,32], index: 2, kind: input, shape index: {}]
  %s3 = inlined_call_operand.vmem [shape: f32[32,128], index: 3, kind: input, shape index: {}]
  %s4 = inlined_call_operand.vmem [shape: f32[1,128], index: 4, kind: input, shape index: {}]
  %s5 = inlined_call_operand.vmem [shape: f32[1,128], index: 5, kind: input, shape index: {}]
  %s6 = inlined_call_operand.hbm [shape: f32[64,128], index: 6, kind: output, shape index: {}]
  %s7 = sld [smem:[#allocation0]]
  $region57: #{tpu_custom_call.1} parent=0
    _
  %s9 = ssub.s32 1, %s7
  %s10 = scalar_select 0, %s9, %s7
  $region1: #{tpu_custom_call.1} parent=0
    #allocation2 [shape = 'u8[8192]{0}', space=vmem, size = 0x2000, scoped, tag = 'output window, operand 0']
    #allocation3 [shape = 's32[2]{0}', space=sflag, size = 0x8, scoped, tag = 'scoped memory for tpu_custom_call.1']
    %11 = vsyncpa [#allocation3], 0
    %s12 = scalar_lea.sflag [#allocation3], 1
    %13 = vsyncpa %s12, 0
    loop: start=0, step=1, limit=10
    $region2: #{tpu_custom_call.1} parent=1 // loop_pre_header
      _
    $region3: #{tpu_custom_call.1} parent=1 // loop_header
      %s15 = sphi 0, %s19
      %p16 = scmp.ge.s32.totalorder %s15, 10
      %s25 = sphi 0, %s27
      %s28 = sphi 0, %s25
      %s29 = sphi 0, %s28
      %s45 = sphi 0, %s29
      %s49 = sphi 0, %s49
      %s51 = sphi 0, %s49
      %s52 = sphi 0, %s51
      %s66 = sphi 0, %s52
      %s70 = sphi 0, %s70
      %s72 = sphi 0, %s70
      %s73 = sphi 0, %s72
      %s87 = sphi 0, %s73
      %s91 = sphi 0, %s91
      %s93 = sphi 0, %s91
      %s94 = sphi 0, %s93
      %s108 = sphi 0, %s94
      %s112 = sphi 0, %s112
      %s114 = sphi 0, %s112
      %s115 = sphi 0, %s114
      %s129 = sphi 0, %s115
      %s133 = sphi 0, %s133
      %s135 = sphi 0, %s133
      %s136 = sphi 0, %s135
      %s150 = sphi 0, %s136
      %s156 = sphi 0, %s158
      %s159 = sphi 0, %s156
      %s160 = sphi 0, %s159
      %s176 = sphi 0, %s160
    $region4: #{tpu_custom_call.1} parent=1 // loop_header_branch
      %18 = sbr.rel (%p16) target = $region8
    $region5: #{tpu_custom_call.1} parent=1 // loop_body
      %s20 = ssub.s32 %s15, 1
      %s21 = ssub.s32 %s15, 2
      %s22 = sadd.s32 %s15, 1
      %s23 = ssub.s32 %s15, %s22
      %p24 = scmp.eq.s32.totalorder %s23, 0
      %s26 = sadd.s32 %s25, 1
      %s27 = scalar_select %p24, %s25, %s26
      %p30 = pneg %p24
      %p31 = scmp.eq.s32.totalorder %s15, 7
      %p32 = por %p30, %p31
      %p33 = scmp.ne.s32.totalorder %s25, %s28
      %p34 = scmp.eq.s32.totalorder %s15, 0
      %p35 = por %p33, %p34
      %p36 = scmp.ne.s32.totalorder %s25, %s28
      %p37 = scmp.eq.s32.totalorder %s20, 7
      %p38 = por %p36, %p37
      %p39 = scmp.ne.s32.totalorder %s28, %s29
      %p40 = scmp.eq.s32.totalorder %s20, 0
      %p41 = por %p39, %p40
      %p42 = scmp.ne.s32.totalorder %s28, %s29
      %p43 = scmp.eq.s32.totalorder %s21, 7
      %p44 = por %p42, %p43
      %p46 = scmp.ne.s32.totalorder %s29, %s45
      %p47 = scmp.eq.s32.totalorder %s21, 0
      %p48 = por %p46, %p47
      %s50 = sadd.s32 %s49, 1
      %p53 = scmp.eq.s32.totalorder %s15, 7
      %p54 = scmp.ne.s32.totalorder %s49, %s51
      %p55 = scmp.eq.s32.totalorder %s15, 0
      %p56 = por %p54, %p55
      %p57 = scmp.ne.s32.totalorder %s49, %s51
      %p58 = scmp.eq.s32.totalorder %s20, 7
      %p59 = por %p57, %p58
      %p60 = scmp.ne.s32.totalorder %s51, %s52
      %p61 = scmp.eq.s32.totalorder %s20, 0
      %p62 = por %p60, %p61
      %p63 = scmp.ne.s32.totalorder %s51, %s52
      %p64 = scmp.eq.s32.totalorder %s21, 7
      %p65 = por %p63, %p64
      %p67 = scmp.ne.s32.totalorder %s52, %s66
      %p68 = scmp.eq.s32.totalorder %s21, 0
      %p69 = por %p67, %p68
      %s71 = sadd.s32 %s70, 1
      %p74 = scmp.eq.s32.totalorder %s15, 7
      %p75 = scmp.ne.s32.totalorder %s70, %s72
      %p76 = scmp.eq.s32.totalorder %s15, 0
      %p77 = por %p75, %p76
      %p78 = scmp.ne.s32.totalorder %s70, %s72
      %p79 = scmp.eq.s32.totalorder %s20, 7
      %p80 = por %p78, %p79
      %p81 = scmp.ne.s32.totalorder %s72, %s73
      %p82 = scmp.eq.s32.totalorder %s20, 0
      %p83 = por %p81, %p82
      %p84 = scmp.ne.s32.totalorder %s72, %s73
      %p85 = scmp.eq.s32.totalorder %s21, 7
      %p86 = por %p84, %p85
      %p88 = scmp.ne.s32.totalorder %s73, %s87
      %p89 = scmp.eq.s32.totalorder %s21, 0
      %p90 = por %p88, %p89
      %s92 = sadd.s32 %s91, 1
      %p95 = scmp.eq.s32.totalorder %s15, 7
      %p96 = scmp.ne.s32.totalorder %s91, %s93
      %p97 = scmp.eq.s32.totalorder %s15, 0
      %p98 = por %p96, %p97
      %p99 = scmp.ne.s32.totalorder %s91, %s93
      %p100 = scmp.eq.s32.totalorder %s20, 7
      %p101 = por %p99, %p100
      %p102 = scmp.ne.s32.totalorder %s93, %s94
      %p103 = scmp.eq.s32.totalorder %s20, 0
      %p104 = por %p102, %p103
      %p105 = scmp.ne.s32.totalorder %s93, %s94
      %p106 = scmp.eq.s32.totalorder %s21, 7
      %p107 = por %p105, %p106
      %p109 = scmp.ne.s32.totalorder %s94, %s108
      %p110 = scmp.eq.s32.totalorder %s21, 0
      %p111 = por %p109, %p110
      %s113 = sadd.s32 %s112, 1
      %p116 = scmp.eq.s32.totalorder %s15, 7
      %p117 = scmp.ne.s32.totalorder %s112, %s114
      %p118 = scmp.eq.s32.totalorder %s15, 0
      %p119 = por %p117, %p118
      %p120 = scmp.ne.s32.totalorder %s112, %s114
      %p121 = scmp.eq.s32.totalorder %s20, 7
      %p122 = por %p120, %p121
      %p123 = scmp.ne.s32.totalorder %s114, %s115
      %p124 = scmp.eq.s32.totalorder %s20, 0
      %p125 = por %p123, %p124
      %p126 = scmp.ne.s32.totalorder %s114, %s115
      %p127 = scmp.eq.s32.totalorder %s21, 7
      %p128 = por %p126, %p127
      %p130 = scmp.ne.s32.totalorder %s115, %s129
      %p131 = scmp.eq.s32.totalorder %s21, 0
      %p132 = por %p130, %p131
      %s134 = sadd.s32 %s133, 1
      %p137 = scmp.eq.s32.totalorder %s15, 7
      %p138 = scmp.ne.s32.totalorder %s133, %s135
      %p139 = scmp.eq.s32.totalorder %s15, 0
      %p140 = por %p138, %p139
      %p141 = scmp.ne.s32.totalorder %s133, %s135
      %p142 = scmp.eq.s32.totalorder %s20, 7
      %p143 = por %p141, %p142
      %p144 = scmp.ne.s32.totalorder %s135, %s136
      %p145 = scmp.eq.s32.totalorder %s20, 0
      %p146 = por %p144, %p145
      %p147 = scmp.ne.s32.totalorder %s135, %s136
      %p148 = scmp.eq.s32.totalorder %s21, 7
      %p149 = por %p147, %p148
      %p151 = scmp.ne.s32.totalorder %s136, %s150
      %p152 = scmp.eq.s32.totalorder %s21, 0
      %p153 = por %p151, %p152
      %s154 = ssub.s32 %s15, %s22
      %p155 = scmp.eq.s32.totalorder %s154, 0
      %s157 = sadd.s32 %s156, 1
      %s158 = scalar_select %p155, %s156, %s157
      %p161 = pneg %p155
      %p162 = scmp.eq.s32.totalorder %s15, 7
      %p163 = por %p161, %p162
      %p164 = scmp.ne.s32.totalorder %s156, %s159
      %p165 = scmp.eq.s32.totalorder %s15, 0
      %p166 = por %p164, %p165
      %p167 = scmp.ne.s32.totalorder %s156, %s159
      %p168 = scmp.eq.s32.totalorder %s20, 7
      %p169 = por %p167, %p168
      %p170 = scmp.ne.s32.totalorder %s159, %s160
      %p171 = scmp.eq.s32.totalorder %s20, 0
      %p172 = por %p170, %p171
      %p173 = scmp.ne.s32.totalorder %s159, %s160
      %p174 = scmp.eq.s32.totalorder %s21, 7
      %p175 = por %p173, %p174
      %p177 = scmp.ne.s32.totalorder %s160, %s176
      %p178 = scmp.eq.s32.totalorder %s21, 0
      %p179 = por %p177, %p178
      %p180 = scmp.le.s32.totalorder 1, %s15
      %p181 = scmp.lt.s32.totalorder %s15, 9
      %p182 = pnand %p180, %p181
      %p183 = pneg %p182
      // Predicated region
      $region9: #{tpu_custom_call.1} parent=5 // pred_check
        _
      $region10: #{tpu_custom_call.1} parent=5 // pred_check_branch
        %185 = sbr.rel (%p182) target = $region12
      $region11: #{tpu_custom_call.1} parent=5 // pred_region
        %s186 = ssub.s32 %s15, 1
        // Predicated region
        $region13: #{tpu_custom_call.1} parent=11 // pred_check
          %p187 = pneg %p62
        $region14: #{tpu_custom_call.1} parent=11 // pred_check_branch
          %189 = sbr.rel (%p187) target = $region16
        $region15: #{tpu_custom_call.1} parent=11 // pred_region
          _
        $region16: #{tpu_custom_call.1} parent=11 // pred_fallthru
          _
        // Predicated region
        $region17: #{tpu_custom_call.1} parent=11 // pred_check
          %p190 = pneg %p83
        $region18: #{tpu_custom_call.1} parent=11 // pred_check_branch
          %192 = sbr.rel (%p190) target = $region20
        $region19: #{tpu_custom_call.1} parent=11 // pred_region
          _
        $region20: #{tpu_custom_call.1} parent=11 // pred_fallthru
          _
        // Predicated region
        $region21: #{tpu_custom_call.1} parent=11 // pred_check
          %p193 = pneg %p104
        $region22: #{tpu_custom_call.1} parent=11 // pred_check_branch
          %195 = sbr.rel (%p193) target = $region24
        $region23: #{tpu_custom_call.1} parent=11 // pred_region
          _
        $region24: #{tpu_custom_call.1} parent=11 // pred_fallthru
          _
        // Predicated region
        $region25: #{tpu_custom_call.1} parent=11 // pred_check
          %p196 = pneg %p125
        $region26: #{tpu_custom_call.1} parent=11 // pred_check_branch
          %198 = sbr.rel (%p196) target = $region28
        $region27: #{tpu_custom_call.1} parent=11 // pred_region
          _
        $region28: #{tpu_custom_call.1} parent=11 // pred_fallthru
          _
        // Predicated region
        $region29: #{tpu_custom_call.1} parent=11 // pred_check
          %p199 = pneg %p146
        $region30: #{tpu_custom_call.1} parent=11 // pred_check_branch
          %201 = sbr.rel (%p199) target = $region32
        $region31: #{tpu_custom_call.1} parent=11 // pred_region
          _
        $region32: #{tpu_custom_call.1} parent=11 // pred_fallthru
          _
      $region12: #{tpu_custom_call.1} parent=5 // pred_fallthru
        _
      %p202 = scmp.lt.s32.totalorder %s15, 8
      // Predicated region
      $region33: #{tpu_custom_call.1} parent=5 // pred_check
        %p203 = pneg %p202
      $region34: #{tpu_custom_call.1} parent=5 // pred_check_branch
        %205 = sbr.rel (%p203) target = $region36
      $region35: #{tpu_custom_call.1} parent=5 // pred_region
        // Predicated region
        $region37: #{tpu_custom_call.1} parent=35 // pred_check
          %p206 = pneg %p35
        $region38: #{tpu_custom_call.1} parent=35 // pred_check_branch
          %208 = sbr.rel (%p206) target = $region40
        $region39: #{tpu_custom_call.1} parent=35 // pred_region
          %p209 = scmp.lt.s32.totalorder %s15, 7
          %s210 = scalar_select %p209, %s15, 7
          %s211 = smul.addr %s210, 8
          %s212 = scalar_lea.vmem %s0, %s211
        $region40: #{tpu_custom_call.1} parent=35 // pred_fallthru
          _
      $region36: #{tpu_custom_call.1} parent=5 // pred_fallthru
        _
      %p213 = scmp.le.s32.totalorder 1, %s15
      %p214 = scmp.lt.s32.totalorder %s15, 9
      %p215 = pnand %p213, %p214
      %p216 = pneg %p215
      // Predicated region
      $region41: #{tpu_custom_call.1} parent=5 // pred_check
        _
      $region42: #{tpu_custom_call.1} parent=5 // pred_check_branch
        %218 = sbr.rel (%p215) target = $region44
      $region43: #{tpu_custom_call.1} parent=5 // pred_region
        %s219 = ssub.s32 %s15, 1
        %p220 = scmp.lt.s32.totalorder %s20, 7
        %s221 = scalar_select %p220, %s20, 7
        %s222 = smul.addr %s221, 8
        %s223 = scalar_lea.vmem %s0, %s222
        %p224 = pneg %p41
        %p225 = pneg %p38
        %p226 = pneg %p62
        %p227 = pneg %p59
        %p228 = pneg %p83
        %p229 = pneg %p80
        %p230 = pneg %p104
        %p231 = pneg %p101
        %p232 = pneg %p125
        %p233 = pneg %p122
        %p234 = pneg %p146
        %p235 = pneg %p143
        %p236 = pneg %p172
        %p237 = pneg %p169
        %s238 = sand.u32 %s159, 1
        %s239 = scalar_lea.sflag [#allocation3], %s238
        %s240 = sand.u32 %s159, 1
        %s241 = smul.addr %s240, 8
        %s242 = scalar_lea.vmem [#allocation2], %s241
        %p243 = scmp.lt.s32.totalorder %s20, 7
        %s244 = scalar_select %p243, %s20, 7
        %s245 = smul.addr %s244, 8
        %s246 = scalar_lea.vmem %s0, %s245
        %v247 = vld [vmem:[%s246] sm:$0xff]
        %v248 = vld [vmem:[%s1] sm:$0xff]
        %v249 = vld [vmem:[%s1 + $0x8] sm:$0xff]
        %v250 = vld [vmem:[%s1 + $0x10] sm:$0xff]
        %v251 = vld [vmem:[%s1 + $0x18] sm:$0xff]
        %v252 = vld [vmem:[%s2] sm:$0x1]
        %v254 = vlaneseq
        %v255 = vshrl.u32 %v254, 7
        %v256 = vsub.s32 0, %v255
        %v257 = vrot.slane %v252, %v256
        %vm259 = vcmask 261120
        %v261 = vsel %vm259, %v247, 0
        %263 = vmatprep.subr.mxu0 0.0
        %264 = vmatpush1.msra.mxu0 %v248
        %265 = vmatprep.subr.mxu0 0.0
        %266 = vmatpush1.msra.mxu0 %v249
        %267 = vmatprep.subr.mxu0 0.0
        %268 = vmatpush1.msra.mxu0 %v250
        %269 = vmatprep.subr.mxu0 0.0
        %270 = vmatpush1.msra.mxu0 %v251
        %271 = vmatprep.subr.mxu0 0.0
        %272 = vmatpush1.msra.mxu0 0.0
        %273 = vmatprep.subr.mxu0 0.0
        %274 = vmatpush1.msra.mxu0 0.0
        %275 = vmatprep.subr.mxu0 0.0
        %276 = vmatpush1.msra.mxu0 0.0
        %277 = vmatprep.subr.mxu0 0.0
        %278 = vmatpush1.msra.mxu0 0.0
        %279 = vmatprep.subr.mxu0 0.0
        %280 = vmatpush1.msra.mxu0 0.0
        %281 = vmatprep.subr.mxu0 0.0
        %282 = vmatpush1.msra.mxu0 0.0
        %283 = vmatprep.subr.mxu0 0.0
        %284 = vmatpush1.msra.mxu0 0.0
        %285 = vmatprep.subr.mxu0 0.0
        %286 = vmatpush1.msra.mxu0 0.0
        %287 = vmatprep.subr.mxu0 0.0
        %288 = vmatpush1.msra.mxu0 0.0
        %289 = vmatprep.subr.mxu0 0.0
        %290 = vmatpush1.msra.mxu0 0.0
        %291 = vmatprep.subr.mxu0 0.0
        %292 = vmatpush1.msra.mxu0 0.0
        %293 = vmatprep.subr.mxu0 0.0
        %294 = vmatpush1.msra.mxu0 0.0
        %295 = vmatprep.subr.mxu0 0.0
        %296 = vmatpush1.msra.mxu0 0.0
        %297 = vmatprep.subr.mxu0 0.0
        %298 = vmatpush1.msra.mxu0 0.0
        %299 = vmatprep.subr.mxu0 0.0
        %300 = vmatpush1.msra.mxu0 0.0
        %301 = vmatprep.subr.mxu0 0.0
        %302 = vmatpush1.msra.mxu0 0.0
        %303 = vmatprep.subr.mxu0 0.0
        %304 = vmatpush1.msra.mxu0 0.0
        %305 = vmatprep.subr.mxu0 0.0
        %306 = vmatpush1.msra.mxu0 0.0
        %307 = vmatprep.subr.mxu0 0.0
        %308 = vmatpush1.msra.mxu0 0.0
        %309 = vmatprep.subr.mxu0 0.0
        %310 = vmatpush1.msra.mxu0 0.0
        %311 = vmatprep.subr.mxu0 0.0
        %312 = vmatpush1.msra.mxu0 0.0
        %313 = vmatprep.subr.mxu0 0.0
        %314 = vmatpush1.msra.mxu0 0.0
        %315 = vmatprep.subr.mxu0 0.0
        %316 = vmatpush1.msra.mxu0 0.0
        %317 = vmatprep.subr.mxu0 0.0
        %318 = vmatpush1.msra.mxu0 0.0
        %319 = vmatprep.subr.mxu0 0.0
        %320 = vmatpush1.msra.mxu0 0.0
        %321 = vmatprep.subr.mxu0 0.0
        %322 = vmatpush1.msra.mxu0 0.0
        %323 = vmatprep.subr.mxu0 0.0
        %324 = vmatpush1.msra.mxu0 0.0
        %325 = vmatprep.subr.mxu0 0.0
        %326 = vmatpush1.msra.mxu0 0.0
        %327 = vmatprep.mubr.f32.mxu0 0.0
        %328 = vmatmul.mubr.f32.gmra.mrb[0].mxu0 %v261
        %v329 = vpop.f32.mrb[0].mxu0
        %v330 = vadd.f32 %v257, %v329
        %v331 = vpop.f32.mrb[0].mxu0
        %332 = vdwg.mxu0
        %v333 = vmax.f32 %v330, 0.0
        %s334 = scalar_lea.vmem %s1, 32
        %v335 = vld [vmem:[%s334] sm:$0xff]
        %v336 = vld [vmem:[%s334 + $0x8] sm:$0xff]
        %v337 = vld [vmem:[%s334 + $0x10] sm:$0xff]
        %v338 = vld [vmem:[%s334 + $0x18] sm:$0xff]
        %s339 = scalar_lea.vmem %s2, 1
        %v340 = vld [vmem:[%s339] sm:$0x1]
        %v342 = vlaneseq
        %v343 = vshrl.u32 %v342, 7
        %v344 = vsub.s32 0, %v343
        %v345 = vrot.slane %v340, %v344
        %v348 = vsel %vm259, %v333, 0
        %350 = vmatprep.subr.mxu0 0.0
        %351 = vmatpush1.msra.mxu0 %v335
        %352 = vmatprep.subr.mxu0 0.0
        %353 = vmatpush1.msra.mxu0 %v336
        %354 = vmatprep.subr.mxu0 0.0
        %355 = vmatpush1.msra.mxu0 %v337
        %356 = vmatprep.subr.mxu0 0.0
        %357 = vmatpush1.msra.mxu0 %v338
        %358 = vmatprep.subr.mxu0 0.0
        %359 = vmatpush1.msra.mxu0 0.0
        %360 = vmatprep.subr.mxu0 0.0
        %361 = vmatpush1.msra.mxu0 0.0
        %362 = vmatprep.subr.mxu0 0.0
        %363 = vmatpush1.msra.mxu0 0.0
        %364 = vmatprep.subr.mxu0 0.0
        %365 = vmatpush1.msra.mxu0 0.0
        %366 = vmatprep.subr.mxu0 0.0
        %367 = vmatpush1.msra.mxu0 0.0
        %368 = vmatprep.subr.mxu0 0.0
        %369 = vmatpush1.msra.mxu0 0.0
        %370 = vmatprep.subr.mxu0 0.0
        %371 = vmatpush1.msra.mxu0 0.0
        %372 = vmatprep.subr.mxu0 0.0
        %373 = vmatpush1.msra.mxu0 0.0
        %374 = vmatprep.subr.mxu0 0.0
        %375 = vmatpush1.msra.mxu0 0.0
        %376 = vmatprep.subr.mxu0 0.0
        %377 = vmatpush1.msra.mxu0 0.0
        %378 = vmatprep.subr.mxu0 0.0
        %379 = vmatpush1.msra.mxu0 0.0
        %380 = vmatprep.subr.mxu0 0.0
        %381 = vmatpush1.msra.mxu0 0.0
        %382 = vmatprep.subr.mxu0 0.0
        %383 = vmatpush1.msra.mxu0 0.0
        %384 = vmatprep.subr.mxu0 0.0
        %385 = vmatpush1.msra.mxu0 0.0
        %386 = vmatprep.subr.mxu0 0.0
        %387 = vmatpush1.msra.mxu0 0.0
        %388 = vmatprep.subr.mxu0 0.0
        %389 = vmatpush1.msra.mxu0 0.0
        %390 = vmatprep.subr.mxu0 0.0
        %391 = vmatpush1.msra.mxu0 0.0
        %392 = vmatprep.subr.mxu0 0.0
        %393 = vmatpush1.msra.mxu0 0.0
        %394 = vmatprep.subr.mxu0 0.0
        %395 = vmatpush1.msra.mxu0 0.0
        %396 = vmatprep.subr.mxu0 0.0
        %397 = vmatpush1.msra.mxu0 0.0
        %398 = vmatprep.subr.mxu0 0.0
        %399 = vmatpush1.msra.mxu0 0.0
        %400 = vmatprep.subr.mxu0 0.0
        %401 = vmatpush1.msra.mxu0 0.0
        %402 = vmatprep.subr.mxu0 0.0
        %403 = vmatpush1.msra.mxu0 0.0
        %404 = vmatprep.subr.mxu0 0.0
        %405 = vmatpush1.msra.mxu0 0.0
        %406 = vmatprep.subr.mxu0 0.0
        %407 = vmatpush1.msra.mxu0 0.0
        %408 = vmatprep.subr.mxu0 0.0
        %409 = vmatpush1.msra.mxu0 0.0
        %410 = vmatprep.subr.mxu0 0.0
        %411 = vmatpush1.msra.mxu0 0.0
        %412 = vmatprep.subr.mxu0 0.0
        %413 = vmatpush1.msra.mxu0 0.0
        %414 = vmatprep.mubr.f32.mxu0 0.0
        %415 = vmatmul.mubr.f32.gmra.mrb[0].mxu0 %v348
        %v416 = vpop.f32.mrb[0].mxu0
        %v417 = vadd.f32 %v345, %v416
        %v418 = vpop.f32.mrb[0].mxu0
        %419 = vdwg.mxu0
        %v420 = vmax.f32 %v417, 0.0
        %v421 = vld [vmem:[%s3] sm:$0xff]
        %v422 = vld [vmem:[%s3 + $0x8] sm:$0xff]
        %v423 = vld [vmem:[%s3 + $0x10] sm:$0xff]
        %v424 = vld [vmem:[%s3 + $0x18] sm:$0xff]
        %v425 = vld [vmem:[%s4] sm:$0x1]
        %v427 = vlaneseq
        %v428 = vshrl.u32 %v427, 7
        %v429 = vsub.s32 0, %v428
        %v430 = vrot.slane %v425, %v429
        %v433 = vsel %vm259, %v420, 0
        %435 = vmatprep.subr.mxu0 0.0
        %436 = vmatpush1.msra.mxu0 %v421
        %437 = vmatprep.subr.mxu0 0.0
        %438 = vmatpush1.msra.mxu0 %v422
        %439 = vmatprep.subr.mxu0 0.0
        %440 = vmatpush1.msra.mxu0 %v423
        %441 = vmatprep.subr.mxu0 0.0
        %442 = vmatpush1.msra.mxu0 %v424
        %443 = vmatprep.subr.mxu0 0.0
        %444 = vmatpush1.msra.mxu0 0.0
        %445 = vmatprep.subr.mxu0 0.0
        %446 = vmatpush1.msra.mxu0 0.0
        %447 = vmatprep.subr.mxu0 0.0
        %448 = vmatpush1.msra.mxu0 0.0
        %449 = vmatprep.subr.mxu0 0.0
        %450 = vmatpush1.msra.mxu0 0.0
        %451 = vmatprep.subr.mxu0 0.0
        %452 = vmatpush1.msra.mxu0 0.0
        %453 = vmatprep.subr.mxu0 0.0
        %454 = vmatpush1.msra.mxu0 0.0
        %455 = vmatprep.subr.mxu0 0.0
        %456 = vmatpush1.msra.mxu0 0.0
        %457 = vmatprep.subr.mxu0 0.0
        %458 = vmatpush1.msra.mxu0 0.0
        %459 = vmatprep.subr.mxu0 0.0
        %460 = vmatpush1.msra.mxu0 0.0
        %461 = vmatprep.subr.mxu0 0.0
        %462 = vmatpush1.msra.mxu0 0.0
        %463 = vmatprep.subr.mxu0 0.0
        %464 = vmatpush1.msra.mxu0 0.0
        %465 = vmatprep.subr.mxu0 0.0
        %466 = vmatpush1.msra.mxu0 0.0
        %467 = vmatprep.subr.mxu0 0.0
        %468 = vmatpush1.msra.mxu0 0.0
        %469 = vmatprep.subr.mxu0 0.0
        %470 = vmatpush1.msra.mxu0 0.0
        %471 = vmatprep.subr.mxu0 0.0
        %472 = vmatpush1.msra.mxu0 0.0
        %473 = vmatprep.subr.mxu0 0.0
        %474 = vmatpush1.msra.mxu0 0.0
        %475 = vmatprep.subr.mxu0 0.0
        %476 = vmatpush1.msra.mxu0 0.0
        %477 = vmatprep.subr.mxu0 0.0
        %478 = vmatpush1.msra.mxu0 0.0
        %479 = vmatprep.subr.mxu0 0.0
        %480 = vmatpush1.msra.mxu0 0.0
        %481 = vmatprep.subr.mxu0 0.0
        %482 = vmatpush1.msra.mxu0 0.0
        %483 = vmatprep.subr.mxu0 0.0
        %484 = vmatpush1.msra.mxu0 0.0
        %485 = vmatprep.subr.mxu0 0.0
        %486 = vmatpush1.msra.mxu0 0.0
        %487 = vmatprep.subr.mxu0 0.0
        %488 = vmatpush1.msra.mxu0 0.0
        %489 = vmatprep.subr.mxu0 0.0
        %490 = vmatpush1.msra.mxu0 0.0
        %491 = vmatprep.subr.mxu0 0.0
        %492 = vmatpush1.msra.mxu0 0.0
        %493 = vmatprep.subr.mxu0 0.0
        %494 = vmatpush1.msra.mxu0 0.0
        %495 = vmatprep.subr.mxu0 0.0
        %496 = vmatpush1.msra.mxu0 0.0
        %497 = vmatprep.subr.mxu0 0.0
        %498 = vmatpush1.msra.mxu0 0.0
        %499 = vmatprep.mubr.f32.mxu0 0.0
        %500 = vmatmul.mubr.f32.gmra.mrb[0].mxu0 %v433
        %v501 = vpop.f32.mrb[0].mxu0
        %v502 = vadd.f32 %v430, %v501
        %v503 = vpop.f32.mrb[0].mxu0
        %504 = vdwg.mxu0
        %v505 = vmax.f32 %v502, 0.0
        %v506 = vld [vmem:[%s5] sm:$0x1]
        %v508 = vlaneseq
        %v509 = vshrl.u32 %v508, 7
        %v510 = vsub.s32 0, %v509
        %v511 = vrot.slane %v506, %v510
        %v513 = vmul.f32 %v505, %v511
        %514 = vadd.xlane.f32.xlu0 %v513
        %v515 = vpop.xlane.xlu0 %514
        %v516 = vmax.f32 %v515, 0.0
        %v517 = vand.u32 2147483647, %v515
        %v518 = vsub.f32 0.0, %v517
        %v519 = vmul.f32 %v518, 1.442695
        %v520 = vpow.pop %v519
        %v521 = vadd.f32 %v520, 1.0
        %v522 = vlog2.pop %v521
        %v523 = vmul.f32 %v522, 0.6931472
        %v524 = vmul.f32 -0.5, %v520
        %v525 = vadd.f32 %v524, 1.0
        %v526 = vmul.f32 %v525, %v520
        %v527 = vand.u32 2147483647, %v520
        %vm528 = vcmp.lt.f32.partialorder %v527, 0.0004427343
        %v529 = vsel %vm528, %v526, %v523
        %v530 = vadd.f32 %v516, %v529
        %v531 = vlaneseq
        %v532 = vand.u32 %v531, 127
        %vm533 = vcmp.eq.s32.totalorder %v532, 32
        %v534 = vsel %vm533, %v530, %v505
        %535 = vst [vmem:[%s242] sm:$0xff] %v534
        %s536 = sand.u32 %s159, 1
        %s537 = scalar_lea.sflag [#allocation3], %s536
        %s538 = sand.u32 %s159, 1
        %s539 = smul.addr %s538, 8
        %s540 = scalar_lea.vmem [#allocation2], %s539
        // Predicated region
        $region45: #{tpu_custom_call.1} parent=43 // pred_check
          %p541 = pneg %p169
        $region46: #{tpu_custom_call.1} parent=43 // pred_check_branch
          %543 = sbr.rel (%p541) target = $region48
        $region47: #{tpu_custom_call.1} parent=43 // pred_region
          %s545 = ssub.s32 128, 128
          %546 = vsyncadd %s537, %s545
          %s547 = smul.addr %s20, 128
          %s548 = scalar_lea.hbm %s6, %s547
          %s550 = sshll.u32 %s540, 4
          %s551 = int_to_ptr.vmem [resolvable:$true] %s550
          %553 = dma.vmem_to_hbm [thread:$0]  %s551, 128, %s548, %s537
        $region48: #{tpu_custom_call.1} parent=43 // pred_fallthru
          _
      $region44: #{tpu_custom_call.1} parent=5 // pred_fallthru
        _
      %p554 = scmp.le.s32.totalorder 2, %s15
      // Predicated region
      $region49: #{tpu_custom_call.1} parent=5 // pred_check
        %p555 = pneg %p554
      $region50: #{tpu_custom_call.1} parent=5 // pred_check_branch
        %557 = sbr.rel (%p555) target = $region52
      $region51: #{tpu_custom_call.1} parent=5 // pred_region
        %s558 = ssub.s32 %s15, 2
        // Predicated region
        $region53: #{tpu_custom_call.1} parent=51 // pred_check
          %p559 = pneg %p175
        $region54: #{tpu_custom_call.1} parent=51 // pred_check_branch
          %561 = sbr.rel (%p559) target = $region56
        $region55: #{tpu_custom_call.1} parent=51 // pred_region
          %s562 = sand.u32 %s160, 1
          %s563 = scalar_lea.sflag [#allocation3], %s562
          %s564 = sand.u32 %s160, 1
          %s565 = smul.addr %s564, 8
          %s566 = scalar_lea.vmem [#allocation2], %s565
          %567 = dma.done %s563, 128
        $region56: #{tpu_custom_call.1} parent=51 // pred_fallthru
          _
      $region52: #{tpu_custom_call.1} parent=5 // pred_fallthru
        _
    $region6: #{tpu_custom_call.1} parent=1 // loop_footer
      %s19 = sadd.s32 1, %s15
    $region7: #{tpu_custom_call.1} parent=1 // loop_footer_branch
      %14 = sbr.rel target = $region3
    $region8: #{tpu_custom_call.1} parent=1 // loop_exit
      _
    %568 = vsyncpa [#allocation3], 1
    %s569 = scalar_lea.sflag [#allocation3], 1
    %570 = vsyncpa %s569, 1

</llo_original>
